<compile_context>
chip_gen: v5e
topology: v5e:2x2
jax: 0.10.0
libtpu: 0.0.40
codegen_flags: <defaults>
</compile_context>

<pallas_src>
import functools

import jax
import jax.numpy as jnp
import numpy as np
from jax.experimental import pallas as pl
from jax.experimental.pallas import tpu as pltpu


# ----------------------------- VMEM / tile helpers ----------------------------- #

def _vmem_limit_bytes():
    """Scoped VMEM limit: 64 MiB on v5e/v6e (128 MiB physical), 32 MiB on v7x."""
    default = 32 * 1024 * 1024
    try:
        info = pltpu.get_tpu_info()
    except Exception:
        return default
    cap = None
    for name in ("vmem_capacity_bytes", "vmem_bytes", "vmem_size_bytes"):
        cap = getattr(info, name, None)
        if cap:
            break
    if not cap:
        return default
    return int(min(max(cap // 2, default), 64 * 1024 * 1024))


def _largest_divisor_at_most(n, cap):
    cap = max(1, min(n, int(cap)))
    for d in range(cap, 0, -1):
        if n % d == 0:
            return d
    return 1


def _pick_c_tile(c, cap):
    """Multiple-of-8 divisor of c that is <= cap, else the full c."""
    if c <= cap:
        return c
    t = (int(cap) // 8) * 8
    while t >= 8:
        if c % t == 0:
            return t
        t -= 8
    return c


def _pick_hw_tile(hw, cap):
    """Prefer a lane-dense (multiple-of-128) divisor of hw <= cap; else full hw;
    else the largest divisor <= cap (masked stores, last resort)."""
    cap = int(cap)
    if hw <= cap:
        return hw
    t = (cap // 128) * 128
    while t >= 128:
        if hw % t == 0:
            return t
        t -= 128
    for d in range(min(cap, hw), 0, -1):
        if hw % d == 0:
            return d
    return hw


# -------------------------------- Pallas kernels ------------------------------- #

def _fused_se_kernel(x_ref, w1_ref, b1_ref, w2_ref, b2_ref, out_ref, att_ref, *, inv_hw):
    """Single-pass SE: global-avg-pool + excitation MLP + broadcast gate multiply.

    x_ref/out_ref: (bt, C, HW); att_ref: (bt, C, 1).  The spatial reduce runs once
    per batch-tile; the gate multiply stays in the input dtype (bf16 on bf16 maps).
    """
    x = x_ref[...]                                                    # (bt, C, HW)
    pooled = jnp.sum(x.astype(jnp.float32), axis=-1) * inv_hw          # (bt, C) f32
    h = jnp.dot(pooled, w1_ref[...], preferred_element_type=jnp.float32) + b1_ref[...]
    h = jnp.maximum(h, 0.0)                                            # ReLU
    z = jnp.dot(h, w2_ref[...], preferred_element_type=jnp.float32) + b2_ref[...]
    att = 1.0 / (1.0 + jnp.exp(-z))                                    # sigmoid, (bt, C)

    att_ref[...] = att[:, :, None].astype(att_ref.dtype)
    gate = att.astype(x_ref.dtype)[:, :, None]                         # (bt, C, 1)
    out_ref[...] = (x * gate).astype(out_ref.dtype)


def _pool_kernel(x_ref, pooled_ref, acc_ref, *, inv_hw):
    """Tiled global average pool (fallback pass 1).  Grid: (B, C//ct, HW//hwp)."""
    t = pl.program_id(2)

    @pl.when(t == 0)
    def _():
        acc_ref[...] = jnp.zeros_like(acc_ref)

    acc_ref[...] += jnp.sum(x_ref[...].astype(jnp.float32), axis=-1, keepdims=True)

    # Output block index is constant over the reduction axis; it is only written
    # back after the final spatial step (standard Pallas accumulator pattern).
    @pl.when(t == pl.num_programs(2) - 1)
    def _():
        pooled_ref[...] = acc_ref[...] * inv_hw


def _scale_kernel(x_ref, att_ref, o_ref):
    """out = x * attention (fallback pass 2); attention broadcast along HW lanes."""
    o_ref[...] = (x_ref[...] * att_ref[...]).astype(o_ref.dtype)


# ----------------------------------- forward ----------------------------------- #

def se_module_at_forward(x, w1, b1, w2, b2, *,
                         b_tile=None, max_fused_slab_bytes=None,
                         pool_c_tile=None, pool_hw_tile=None,
                         scale_c_tile=None, scale_hw_tile=None):
    """SEModule_AT forward.

    x : (B, C, H, W) NCHW feature map (f32 or bf16).
    w1: (C//r, C)   fc1 (1x1 conv) weight     b1: (C//r,) bias
    w2: (C, C//r)   fc2 (1x1 conv) weight     b2: (C,)    bias
    Returns (x * attention  with shape (B, C, H, W),  attention (B, C, 1, 1)).
    """
    B, C, H, W = x.shape
    HW = H * W
    Cr = w1.shape[0]
    esize = jnp.dtype(x.dtype).itemsize
    out_dtype = x.dtype

    x3 = x.reshape(B, C, HW)                        # metadata-only, stays NCHW
    w1_t = jnp.transpose(w1).astype(jnp.float32)    # (C, Cr)
    w2_t = jnp.transpose(w2).astype(jnp.float32)    # (Cr, C)
    b1_r = b1.reshape(1, Cr).astype(jnp.float32)
    b2_r = b2.reshape(1, C).astype(jnp.float32)

    vmem_limit = _vmem_limit_bytes()
    slab_bytes = C * HW * esize                     # one image's feature map
    fused_budget = (vmem_limit // 8) if max_fused_slab_bytes is None else max_fused_slab_bytes

    # ---------------- fused single-pass path (x read exactly once) ----------------
    if slab_bytes <= fused_budget:
        if b_tile is not None:
            bt = b_tile
            assert B % bt == 0, "b_tile must divide the batch dimension"
        else:
            max_bt = max(1, fused_budget // max(1, slab_bytes))
            if B >= 2:
                max_bt = min(max_bt, max(1, B // 2))   # >= 2 parallel programs (v7x megacore)
            bt = _largest_divisor_at_most(B, max_bt)

        out3, att3 = pl.pallas_call(
            functools.partial(_fused_se_kernel, inv_hw=1.0 / float(HW)),
            grid=(B // bt,),
            in_specs=[
                pl.BlockSpec((bt, C, HW), lambda b: (b, 0, 0)),   # x slab
                pl.BlockSpec((C, Cr), lambda b: (0, 0)),          # fc1 weight (VMEM-resident)
                pl.BlockSpec((1, Cr), lambda b: (0, 0)),          # fc1 bias
                pl.BlockSpec((Cr, C), lambda b: (0, 0)),          # fc2 weight (VMEM-resident)
                pl.BlockSpec((1, C), lambda b: (0, 0)),           # fc2 bias
            ],
            out_specs=(
                pl.BlockSpec((bt, C, HW), lambda b: (b, 0, 0)),   # gated output
                pl.BlockSpec((bt, C, 1), lambda b: (b, 0, 0)),    # attention
            ),
            out_shape=(jax.ShapeDtypeStruct((B, C, HW), out_dtype),
                       jax.ShapeDtypeStruct((B, C, 1), out_dtype)),
            compiler_params=pltpu.CompilerParams(
                dimension_semantics=("parallel",),
                vmem_limit_bytes=vmem_limit),
        )(x3, w1_t, b1_r, w2_t, b2_r)

        return out3.reshape(B, C, H, W), att3.reshape(B, C, 1, 1)

    # -------------- two-pass fallback (oversized per-image feature maps) ----------
    pool_budget = vmem_limit // 3     # only the input block is double-buffered
    scale_budget = vmem_limit // 5    # input + output blocks double-buffered

    # Pass 1: tiled global average pool -> (B, C, 1) f32.
    if pool_c_tile is not None:
        ct = pool_c_tile
    else:
        ct_cap = C if B >= 2 else max(8, C // 2)   # >= 2 parallel programs even at B == 1
        ct = _pick_c_tile(C, ct_cap)
    assert C % ct == 0, "pool_c_tile must divide the channel dimension"
    if pool_hw_tile is not None:
        hwp = pool_hw_tile
    else:
        hwp = _pick_hw_tile(HW, max(128, pool_budget // max(1, ct * esize)))
    assert HW % hwp == 0, "pool_hw_tile must divide H*W"

    pooled = pl.pallas_call(
        functools.partial(_pool_kernel, inv_hw=1.0 / float(HW)),
        grid=(B, C // ct, HW // hwp),
        in_specs=[pl.BlockSpec((1, ct, hwp), lambda b, c, t: (b, c, t))],
        out_specs=pl.BlockSpec((1, ct, 1), lambda b, c, t: (b, c, 0)),
        out_shape=jax.ShapeDtypeStruct((B, C, 1), jnp.float32),
        scratch_shapes=[pltpu.VMEM((1, ct, 1), jnp.float32)],
        compiler_params=pltpu.CompilerParams(
            dimension_semantics=("parallel", "parallel", "arbitrary"),
            vmem_limit_bytes=vmem_limit),
    )(x3)

    # Tiny excitation MLP in plain XLA (~B*C*Cr flops — negligible vs streaming x).
    pooled2 = pooled.reshape(B, C)
    h = jnp.maximum(jnp.dot(pooled2, w1_t) + b1_r, 0.0)
    att_f32 = jax.nn.sigmoid(jnp.dot(h, w2_t) + b2_r)          # (B, C) f32
    att3 = att_f32.astype(out_dtype).reshape(B, C, 1)

    # Pass 2: broadcast gate multiply, lane-dense output tiles.
    if scale_c_tile is not None:
        ct2 = scale_c_tile
    else:
        ct2 = _pick_c_tile(C, 512)
    if scale_hw_tile is not None:
        hws = scale_hw_tile
    else:
        hws = _pick_hw_tile(HW, max(128, scale_budget // max(1, ct2 * esize)))
        if ct2 * hws * esize > scale_budget and scale_c_tile is None:
            ct2 = _pick_c_tile(C, max(8, scale_budget // max(1, hws * esize)))
    assert C % ct2 == 0, "scale_c_tile must divide the channel dimension"
    assert HW % hws == 0, "scale_hw_tile must divide H*W"

    out3 = pl.pallas_call(
        _scale_kernel,
        grid=(B, C // ct2, HW // hws),
        in_specs=[
            pl.BlockSpec((1, ct2, hws), lambda b, c, t: (b, c, t)),   # x tile
            pl.BlockSpec((1, ct2, 1), lambda b, c, t: (b, c, 0)),     # attention slice
        ],
        out_specs=pl.BlockSpec((1, ct2, hws), lambda b, c, t: (b, c, t)),
        out_shape=jax.ShapeDtypeStruct((B, C, HW), out_dtype),
        compiler_params=pltpu.CompilerParams(
            dimension_semantics=("parallel", "parallel", "parallel"),
            vmem_limit_bytes=vmem_limit),
    )(x3, att3)

    return out3.reshape(B, C, H, W), att3.reshape(B, C, 1, 1)


# ------------------------------ pure-JAX reference ------------------------------ #

def se_reference(x, w1, b1, w2, b2):
    pooled = jnp.mean(x.astype(jnp.float32), axis=(2, 3))             # (B, C)
    h = jnp.maximum(pooled @ w1.T + b1[None, :], 0.0)
    att = jax.nn.sigmoid(h @ w2.T + b2[None, :])                      # (B, C)
    out = x.astype(jnp.float32) * att[:, :, None, None]
    return out, att.reshape(x.shape[0], x.shape[1], 1, 1)


if __name__ == "__main__":
    key = jax.random.PRNGKey(0)
    kx, k1, kb1, k2, kb2 = jax.random.split(key, 5)

    # Small but representative SE-block shapes.
    B, C, H, W = 2, 128, 16, 16
    reduction = 8
    Cr = C // reduction

    x = jax.random.normal(kx, (B, C, H, W), jnp.float32)
    w1 = 0.3 * jax.random.normal(k1, (Cr, C), jnp.float32)   # fc1: Conv2d(C, C//r, 1)
    b1 = 0.3 * jax.random.normal(kb1, (Cr,), jnp.float32)
    w2 = 0.3 * jax.random.normal(k2, (C, Cr), jnp.float32)   # fc2: Conv2d(C//r, C, 1)
    b2 = 0.5 * jax.random.normal(kb2, (C,), jnp.float32)

    out_ref, att_ref = se_reference(x, w1, b1, w2, b2)
    att_ref2 = np.asarray(att_ref).reshape(B, C)

    # 1) Default fused single-pass path.
    out, att = jax.jit(se_module_at_forward)(x, w1, b1, w2, b2)
    jax.block_until_ready((out, att))
    np.testing.assert_allclose(np.asarray(att).reshape(B, C), att_ref2, rtol=5e-3, atol=5e-3)
    np.testing.assert_allclose(np.asarray(out), np.asarray(out_ref), rtol=5e-3, atol=2e-2)

    # 2) Forced two-pass fallback (pool kernel + XLA micro-MLP + scale kernel) with
    #    small explicit tiles so the multi-step reduction / C / HW tiling paths run.
    twopass = jax.jit(functools.partial(
        se_module_at_forward, max_fused_slab_bytes=0,
        pool_c_tile=64, pool_hw_tile=128, scale_c_tile=64, scale_hw_tile=128))
    out2, att2 = twopass(x, w1, b1, w2, b2)
    jax.block_until_ready((out2, att2))
    np.testing.assert_allclose(np.asarray(att2).reshape(B, C), att_ref2, rtol=5e-3, atol=5e-3)
    np.testing.assert_allclose(np.asarray(out2), np.asarray(out_ref), rtol=5e-3, atol=2e-2)

    # 3) bf16 feature map through the fused path (bf16 gate-multiply branch).
    xb = x.astype(jnp.bfloat16)
    outb, attb = jax.jit(se_module_at_forward)(xb, w1, b1, w2, b2)
    jax.block_until_ready((outb, attb))
    np.testing.assert_allclose(np.asarray(attb, dtype=np.float32).reshape(B, C),
                               att_ref2, rtol=3e-2, atol=3e-2)
    np.testing.assert_allclose(np.asarray(outb, dtype=np.float32),
                               np.asarray(out_ref), rtol=5e-2, atol=5e-2)

    print("KERNEL_OK")
</pallas_src>

<mosaic_0001>
module attributes {stable_mosaic.version = 11 : i64} {
  func.func @_fused_se_kernel(%arg0: i32, %arg1: memref<1x128x256xf32, #tpu.memory_space<vmem>>, %arg2: memref<128x16xf32, #tpu.memory_space<vmem>>, %arg3: memref<1x16xf32, #tpu.memory_space<vmem>>, %arg4: memref<16x128xf32, #tpu.memory_space<vmem>>, %arg5: memref<1x128xf32, #tpu.memory_space<vmem>>, %arg6: memref<1x128x256xf32, #tpu.memory_space<vmem>>, %arg7: memref<1x128x1xf32, #tpu.memory_space<vmem>>) attributes {dimension_semantics = [#tpu.dimension_semantics<parallel>], iteration_bounds = array<i64: 2>, scalar_prefetch = 0 : i64, scratch_operands = 0 : i64, tpu.core_type = #tpu.core_type<tc>, window_params = [{transform_indices = @transform_0, window_bounds = array<i64: 1, 128, 256>}, {pipeline_mode = #tpu.pipeline_mode<synchronous>, transform_indices = @transform_1, window_bounds = array<i64: 128, 16>}, {pipeline_mode = #tpu.pipeline_mode<synchronous>, transform_indices = @transform_2, window_bounds = array<i64: 1, 16>}, {pipeline_mode = #tpu.pipeline_mode<synchronous>, transform_indices = @transform_3, window_bounds = array<i64: 16, 128>}, {pipeline_mode = #tpu.pipeline_mode<synchronous>, transform_indices = @transform_4, window_bounds = array<i64: 1, 128>}, {transform_indices = @transform_5, window_bounds = array<i64: 1, 128, 256>}, {transform_indices = @transform_6, window_bounds = array<i64: 1, 128, 1>}]} {
    %c0 = arith.constant 0 : index
    %c0_0 = arith.constant 0 : index
    %c0_1 = arith.constant 0 : index
    %0 = vector.load %arg1[%c0, %c0_0, %c0_1] : memref<1x128x256xf32, #tpu.memory_space<vmem>>, vector<1x128x256xf32>
    %cst = arith.constant dense<0.000000e+00> : vector<1x128xf32>
    %1 = vector.multi_reduction <add>, %0, %cst [2] : vector<1x128x256xf32> to vector<1x128xf32>
    %cst_2 = arith.constant 3.906250e-03 : f32
    %2 = vector.broadcast %cst_2 : f32 to vector<1x128xf32>
    %3 = arith.mulf %1, %2 : vector<1x128xf32>
    %c0_3 = arith.constant 0 : index
    %c0_4 = arith.constant 0 : index
    %4 = vector.load %arg2[%c0_3, %c0_4] : memref<128x16xf32, #tpu.memory_space<vmem>>, vector<128x16xf32>
    %cst_5 = arith.constant dense<0.000000e+00> : vector<1x16xf32>
    %5 = tpu.matmul %3, %4, %cst_5 {dimension_numbers = #tpu.dot_dimension_numbers<[1], [0], [0], [1], [0, 0, 1, 1], [], []>} : vector<1x128xf32>, vector<128x16xf32>, vector<1x16xf32> -> vector<1x16xf32>
    %c0_6 = arith.constant 0 : index
    %c0_7 = arith.constant 0 : index
    %6 = vector.load %arg3[%c0_6, %c0_7] : memref<1x16xf32, #tpu.memory_space<vmem>>, vector<1x16xf32>
    %7 = arith.addf %5, %6 : vector<1x16xf32>
    %cst_8 = arith.constant 0.000000e+00 : f32
    %8 = vector.broadcast %cst_8 : f32 to vector<1x16xf32>
    %9 = arith.maximumf %7, %8 : vector<1x16xf32>
    %c0_9 = arith.constant 0 : index
    %c0_10 = arith.constant 0 : index
    %10 = vector.load %arg4[%c0_9, %c0_10] : memref<16x128xf32, #tpu.memory_space<vmem>>, vector<16x128xf32>
    %cst_11 = arith.constant dense<0.000000e+00> : vector<1x128xf32>
    %11 = tpu.matmul %9, %10, %cst_11 {dimension_numbers = #tpu.dot_dimension_numbers<[1], [0], [0], [1], [0, 0, 1, 1], [], []>} : vector<1x16xf32>, vector<16x128xf32>, vector<1x128xf32> -> vector<1x128xf32>
    %c0_12 = arith.constant 0 : index
    %c0_13 = arith.constant 0 : index
    %12 = vector.load %arg5[%c0_12, %c0_13] : memref<1x128xf32, #tpu.memory_space<vmem>>, vector<1x128xf32>
    %13 = arith.addf %11, %12 : vector<1x128xf32>
    %cst_14 = arith.constant 0.000000e+00 : f32
    %14 = vector.broadcast %cst_14 : f32 to vector<1x128xf32>
    %15 = arith.subf %14, %13 : vector<1x128xf32>
    %16 = math.exp %15 : vector<1x128xf32>
    %cst_15 = arith.constant 1.000000e+00 : f32
    %17 = vector.broadcast %cst_15 : f32 to vector<1x128xf32>
    %18 = arith.addf %17, %16 : vector<1x128xf32>
    %cst_16 = arith.constant 1.000000e+00 : f32
    %19 = vector.broadcast %cst_16 : f32 to vector<1x128xf32>
    %20 = arith.divf %19, %18 : vector<1x128xf32>
    %21 = vector.shape_cast %20 : vector<1x128xf32> to vector<1x128x1xf32>
    %c0_17 = arith.constant 0 : index
    %c0_18 = arith.constant 0 : index
    %c0_19 = arith.constant 0 : index
    %22 = vector.load %arg7[%c0_17, %c0_18, %c0_19] : memref<1x128x1xf32, #tpu.memory_space<vmem>>, vector<1x128x1xf32>
    tpu.vector_store %arg7[%c0_17, %c0_18, %c0_19], %21 {strides = array<i32>} : memref<1x128x1xf32, #tpu.memory_space<vmem>>, vector<1x128x1xf32>,
    %23 = vector.shape_cast %20 : vector<1x128xf32> to vector<1x128x1xf32>
    %24 = vector.broadcast %23 : vector<1x128x1xf32> to vector<1x128x256xf32>
    %25 = arith.mulf %0, %24 : vector<1x128x256xf32>
    %c0_20 = arith.constant 0 : index
    %c0_21 = arith.constant 0 : index
    %c0_22 = arith.constant 0 : index
    %26 = vector.load %arg6[%c0_20, %c0_21, %c0_22] : memref<1x128x256xf32, #tpu.memory_space<vmem>>, vector<1x128x256xf32>
    tpu.vector_store %arg6[%c0_20, %c0_21, %c0_22], %25 {strides = array<i32>} : memref<1x128x256xf32, #tpu.memory_space<vmem>>, vector<1x128x256xf32>,
    return
  }
  func.func @transform_0(%arg0: i32) -> (i32, i32, i32) {
    %c0_i32 = arith.constant 0 : i32
    %c0_i32_0 = arith.constant 0 : i32
    %c0_i32_1 = arith.constant 0 : i32
    return %arg0, %c0_i32, %c0_i32_0 : i32, i32, i32
  }
  func.func @transform_1(%arg0: i32) -> (i32, i32) {
    %c0_i32 = arith.constant 0 : i32
    %c0_i32_0 = arith.constant 0 : i32
    %c0_i32_1 = arith.constant 0 : i32
    return %c0_i32, %c0_i32_0 : i32, i32
  }
  func.func @transform_2(%arg0: i32) -> (i32, i32) {
    %c0_i32 = arith.constant 0 : i32
    %c0_i32_0 = arith.constant 0 : i32
    %c0_i32_1 = arith.constant 0 : i32
    return %c0_i32, %c0_i32_0 : i32, i32
  }
  func.func @transform_3(%arg0: i32) -> (i32, i32) {
    %c0_i32 = arith.constant 0 : i32
    %c0_i32_0 = arith.constant 0 : i32
    %c0_i32_1 = arith.constant 0 : i32
    return %c0_i32, %c0_i32_0 : i32, i32
  }
  func.func @transform_4(%arg0: i32) -> (i32, i32) {
    %c0_i32 = arith.constant 0 : i32
    %c0_i32_0 = arith.constant 0 : i32
    %c0_i32_1 = arith.constant 0 : i32
    return %c0_i32, %c0_i32_0 : i32, i32
  }
  func.func @transform_5(%arg0: i32) -> (i32, i32, i32) {
    %c0_i32 = arith.constant 0 : i32
    %c0_i32_0 = arith.constant 0 : i32
    %c0_i32_1 = arith.constant 0 : i32
    return %arg0, %c0_i32, %c0_i32_0 : i32, i32, i32
  }
  func.func @transform_6(%arg0: i32) -> (i32, i32, i32) {
    %c0_i32 = arith.constant 0 : i32
    %c0_i32_0 = arith.constant 0 : i32
    %c0_i32_1 = arith.constant 0 : i32
    return %arg0, %c0_i32, %c0_i32_0 : i32, i32, i32
  }
}

</mosaic_0001>

<llo_original>
// kernel: se_module_at_forward.1
$region0: #{se_module_at_forward.1}
  #allocation0 [shape = 'u32[]', space=smem, size = 0x4, offset = 0x4, fixed_abs, tag = 'smem constant byte address 0x4 - core index']
  #allocation1 [shape = 'u32[72,128]{1,0:T(1,128)}', space=vmem, size = 0x9000, scoped, tag = 'internal scratch']
  %s0 = inlined_call_operand.vmem [shape: f32[2,128,256], index: 0, kind: input, shape index: {}]
  %s1 = inlined_call_operand.vmem [shape: f32[128,16], index: 1, kind: input, shape index: {}]
  %s2 = inlined_call_operand.vmem [shape: f32[1,16], index: 2, kind: input, shape index: {}]
  %s3 = inlined_call_operand.vmem [shape: f32[16,128], index: 3, kind: input, shape index: {}]
  %s4 = inlined_call_operand.vmem [shape: f32[1,128], index: 4, kind: input, shape index: {}]
  %s5 = inlined_call_operand.vmem [shape: f32[2,128,256], index: 5, kind: output, shape index: {0}]
  %s6 = inlined_call_operand.vmem [shape: f32[2,128,1], index: 6, kind: output, shape index: {1}]
  %7 = xla_tuple %s5, %s6
  %s8 = sld [smem:[#allocation0]]
  $region61: #{se_module_at_forward.1} parent=0
    _
  %s10 = ssub.s32 1, %s8
  %s11 = scalar_select 0, %s10, %s8
  loop: start=0, step=1, limit=4
  $region2: #{se_module_at_forward.1} parent=0 // loop_pre_header
    _
  $region3: #{se_module_at_forward.1} parent=0 // loop_header
    %s13 = sphi 0, %s17
    %p14 = scmp.ge.s32.totalorder %s13, 4
    %s23 = sphi 0, %s25
    %s26 = sphi 0, %s23
    %s27 = sphi 0, %s26
    %s43 = sphi 0, %s27
    %s47 = sphi 0, %s47
    %s49 = sphi 0, %s47
    %s50 = sphi 0, %s49
    %s64 = sphi 0, %s50
    %s68 = sphi 0, %s68
    %s70 = sphi 0, %s68
    %s71 = sphi 0, %s70
    %s85 = sphi 0, %s71
    %s89 = sphi 0, %s89
    %s91 = sphi 0, %s89
    %s92 = sphi 0, %s91
    %s106 = sphi 0, %s92
    %s110 = sphi 0, %s110
    %s112 = sphi 0, %s110
    %s113 = sphi 0, %s112
    %s127 = sphi 0, %s113
    %s133 = sphi 0, %s135
    %s136 = sphi 0, %s133
    %s137 = sphi 0, %s136
    %s153 = sphi 0, %s137
    %s159 = sphi 0, %s161
    %s162 = sphi 0, %s159
    %s163 = sphi 0, %s162
    %s179 = sphi 0, %s163
  $region4: #{se_module_at_forward.1} parent=0 // loop_header_branch
    %16 = sbr.rel (%p14) target = $region8
  $region5: #{se_module_at_forward.1} parent=0 // loop_body
    %s18 = ssub.s32 %s13, 1
    %s19 = ssub.s32 %s13, 2
    %s20 = sadd.s32 %s13, 1
    %s21 = ssub.s32 %s13, %s20
    %p22 = scmp.eq.s32.totalorder %s21, 0
    %s24 = sadd.s32 %s23, 1
    %s25 = scalar_select %p22, %s23, %s24
    %p28 = pneg %p22
    %p29 = scmp.eq.s32.totalorder %s13, 1
    %p30 = por %p28, %p29
    %p31 = scmp.ne.s32.totalorder %s23, %s26
    %p32 = scmp.eq.s32.totalorder %s13, 0
    %p33 = por %p31, %p32
    %p34 = scmp.ne.s32.totalorder %s23, %s26
    %p35 = scmp.eq.s32.totalorder %s18, 1
    %p36 = por %p34, %p35
    %p37 = scmp.ne.s32.totalorder %s26, %s27
    %p38 = scmp.eq.s32.totalorder %s18, 0
    %p39 = por %p37, %p38
    %p40 = scmp.ne.s32.totalorder %s26, %s27
    %p41 = scmp.eq.s32.totalorder %s19, 1
    %p42 = por %p40, %p41
    %p44 = scmp.ne.s32.totalorder %s27, %s43
    %p45 = scmp.eq.s32.totalorder %s19, 0
    %p46 = por %p44, %p45
    %s48 = sadd.s32 %s47, 1
    %p51 = scmp.eq.s32.totalorder %s13, 1
    %p52 = scmp.ne.s32.totalorder %s47, %s49
    %p53 = scmp.eq.s32.totalorder %s13, 0
    %p54 = por %p52, %p53
    %p55 = scmp.ne.s32.totalorder %s47, %s49
    %p56 = scmp.eq.s32.totalorder %s18, 1
    %p57 = por %p55, %p56
    %p58 = scmp.ne.s32.totalorder %s49, %s50
    %p59 = scmp.eq.s32.totalorder %s18, 0
    %p60 = por %p58, %p59
    %p61 = scmp.ne.s32.totalorder %s49, %s50
    %p62 = scmp.eq.s32.totalorder %s19, 1
    %p63 = por %p61, %p62
    %p65 = scmp.ne.s32.totalorder %s50, %s64
    %p66 = scmp.eq.s32.totalorder %s19, 0
    %p67 = por %p65, %p66
    %s69 = sadd.s32 %s68, 1
    %p72 = scmp.eq.s32.totalorder %s13, 1
    %p73 = scmp.ne.s32.totalorder %s68, %s70
    %p74 = scmp.eq.s32.totalorder %s13, 0
    %p75 = por %p73, %p74
    %p76 = scmp.ne.s32.totalorder %s68, %s70
    %p77 = scmp.eq.s32.totalorder %s18, 1
    %p78 = por %p76, %p77
    %p79 = scmp.ne.s32.totalorder %s70, %s71
    %p80 = scmp.eq.s32.totalorder %s18, 0
    %p81 = por %p79, %p80
    %p82 = scmp.ne.s32.totalorder %s70, %s71
    %p83 = scmp.eq.s32.totalorder %s19, 1
    %p84 = por %p82, %p83
    %p86 = scmp.ne.s32.totalorder %s71, %s85
    %p87 = scmp.eq.s32.totalorder %s19, 0
    %p88 = por %p86, %p87
    %s90 = sadd.s32 %s89, 1
    %p93 = scmp.eq.s32.totalorder %s13, 1
    %p94 = scmp.ne.s32.totalorder %s89, %s91
    %p95 = scmp.eq.s32.totalorder %s13, 0
    %p96 = por %p94, %p95
    %p97 = scmp.ne.s32.totalorder %s89, %s91
    %p98 = scmp.eq.s32.totalorder %s18, 1
    %p99 = por %p97, %p98
    %p100 = scmp.ne.s32.totalorder %s91, %s92
    %p101 = scmp.eq.s32.totalorder %s18, 0
    %p102 = por %p100, %p101
    %p103 = scmp.ne.s32.totalorder %s91, %s92
    %p104 = scmp.eq.s32.totalorder %s19, 1
    %p105 = por %p103, %p104
    %p107 = scmp.ne.s32.totalorder %s92, %s106
    %p108 = scmp.eq.s32.totalorder %s19, 0
    %p109 = por %p107, %p108
    %s111 = sadd.s32 %s110, 1
    %p114 = scmp.eq.s32.totalorder %s13, 1
    %p115 = scmp.ne.s32.totalorder %s110, %s112
    %p116 = scmp.eq.s32.totalorder %s13, 0
    %p117 = por %p115, %p116
    %p118 = scmp.ne.s32.totalorder %s110, %s112
    %p119 = scmp.eq.s32.totalorder %s18, 1
    %p120 = por %p118, %p119
    %p121 = scmp.ne.s32.totalorder %s112, %s113
    %p122 = scmp.eq.s32.totalorder %s18, 0
    %p123 = por %p121, %p122
    %p124 = scmp.ne.s32.totalorder %s112, %s113
    %p125 = scmp.eq.s32.totalorder %s19, 1
    %p126 = por %p124, %p125
    %p128 = scmp.ne.s32.totalorder %s113, %s127
    %p129 = scmp.eq.s32.totalorder %s19, 0
    %p130 = por %p128, %p129
    %s131 = ssub.s32 %s13, %s20
    %p132 = scmp.eq.s32.totalorder %s131, 0
    %s134 = sadd.s32 %s133, 1
    %s135 = scalar_select %p132, %s133, %s134
    %p138 = pneg %p132
    %p139 = scmp.eq.s32.totalorder %s13, 1
    %p140 = por %p138, %p139
    %p141 = scmp.ne.s32.totalorder %s133, %s136
    %p142 = scmp.eq.s32.totalorder %s13, 0
    %p143 = por %p141, %p142
    %p144 = scmp.ne.s32.totalorder %s133, %s136
    %p145 = scmp.eq.s32.totalorder %s18, 1
    %p146 = por %p144, %p145
    %p147 = scmp.ne.s32.totalorder %s136, %s137
    %p148 = scmp.eq.s32.totalorder %s18, 0
    %p149 = por %p147, %p148
    %p150 = scmp.ne.s32.totalorder %s136, %s137
    %p151 = scmp.eq.s32.totalorder %s19, 1
    %p152 = por %p150, %p151
    %p154 = scmp.ne.s32.totalorder %s137, %s153
    %p155 = scmp.eq.s32.totalorder %s19, 0
    %p156 = por %p154, %p155
    %s157 = ssub.s32 %s13, %s20
    %p158 = scmp.eq.s32.totalorder %s157, 0
    %s160 = sadd.s32 %s159, 1
    %s161 = scalar_select %p158, %s159, %s160
    %p164 = pneg %p158
    %p165 = scmp.eq.s32.totalorder %s13, 1
    %p166 = por %p164, %p165
    %p167 = scmp.ne.s32.totalorder %s159, %s162
    %p168 = scmp.eq.s32.totalorder %s13, 0
    %p169 = por %p167, %p168
    %p170 = scmp.ne.s32.totalorder %s159, %s162
    %p171 = scmp.eq.s32.totalorder %s18, 1
    %p172 = por %p170, %p171
    %p173 = scmp.ne.s32.totalorder %s162, %s163
    %p174 = scmp.eq.s32.totalorder %s18, 0
    %p175 = por %p173, %p174
    %p176 = scmp.ne.s32.totalorder %s162, %s163
    %p177 = scmp.eq.s32.totalorder %s19, 1
    %p178 = por %p176, %p177
    %p180 = scmp.ne.s32.totalorder %s163, %s179
    %p181 = scmp.eq.s32.totalorder %s19, 0
    %p182 = por %p180, %p181
    %p183 = scmp.le.s32.totalorder 1, %s13
    %p184 = scmp.lt.s32.totalorder %s13, 3
    %p185 = pnand %p183, %p184
    %p186 = pneg %p185
    // Predicated region
    $region9: #{se_module_at_forward.1} parent=5 // pred_check
      _
    $region10: #{se_module_at_forward.1} parent=5 // pred_check_branch
      %188 = sbr.rel (%p185) target = $region12
    $region11: #{se_module_at_forward.1} parent=5 // pred_region
      %s189 = ssub.s32 %s13, 1
      // Predicated region
      $region13: #{se_module_at_forward.1} parent=11 // pred_check
        %p190 = pneg %p60
      $region14: #{se_module_at_forward.1} parent=11 // pred_check_branch
        %192 = sbr.rel (%p190) target = $region16
      $region15: #{se_module_at_forward.1} parent=11 // pred_region
        _
      $region16: #{se_module_at_forward.1} parent=11 // pred_fallthru
        _
      // Predicated region
      $region17: #{se_module_at_forward.1} parent=11 // pred_check
        %p193 = pneg %p81
      $region18: #{se_module_at_forward.1} parent=11 // pred_check_branch
        %195 = sbr.rel (%p193) target = $region20
      $region19: #{se_module_at_forward.1} parent=11 // pred_region
        _
      $region20: #{se_module_at_forward.1} parent=11 // pred_fallthru
        _
      // Predicated region
      $region21: #{se_module_at_forward.1} parent=11 // pred_check
        %p196 = pneg %p102
      $region22: #{se_module_at_forward.1} parent=11 // pred_check_branch
        %198 = sbr.rel (%p196) target = $region24
      $region23: #{se_module_at_forward.1} parent=11 // pred_region
        _
      $region24: #{se_module_at_forward.1} parent=11 // pred_fallthru
        _
      // Predicated region
      $region25: #{se_module_at_forward.1} parent=11 // pred_check
        %p199 = pneg %p123
      $region26: #{se_module_at_forward.1} parent=11 // pred_check_branch
        %201 = sbr.rel (%p199) target = $region28
      $region27: #{se_module_at_forward.1} parent=11 // pred_region
        _
      $region28: #{se_module_at_forward.1} parent=11 // pred_fallthru
        _
    $region12: #{se_module_at_forward.1} parent=5 // pred_fallthru
      _
    %p202 = scmp.lt.s32.totalorder %s13, 2
    // Predicated region
    $region29: #{se_module_at_forward.1} parent=5 // pred_check
      %p203 = pneg %p202
    $region30: #{se_module_at_forward.1} parent=5 // pred_check_branch
      %205 = sbr.rel (%p203) target = $region32
    $region31: #{se_module_at_forward.1} parent=5 // pred_region
      // Predicated region
      $region33: #{se_module_at_forward.1} parent=31 // pred_check
        %p206 = pneg %p33
      $region34: #{se_module_at_forward.1} parent=31 // pred_check_branch
        %208 = sbr.rel (%p206) target = $region36
      $region35: #{se_module_at_forward.1} parent=31 // pred_region
        %p209 = scmp.lt.s32.totalorder %s13, 1
        %s210 = scalar_select %p209, %s13, 1
        %s211 = smul.addr %s210, 32
        %s212 = smul.addr %s211, 8
        %s213 = scalar_lea.vmem %s0, %s212
      $region36: #{se_module_at_forward.1} parent=31 // pred_fallthru
        _
    $region32: #{se_module_at_forward.1} parent=5 // pred_fallthru
      _
    %p214 = scmp.le.s32.totalorder 1, %s13
    %p215 = scmp.lt.s32.totalorder %s13, 3
    %p216 = pnand %p214, %p215
    %p217 = pneg %p216
    // Predicated region
    $region37: #{se_module_at_forward.1} parent=5 // pred_check
      _
    $region38: #{se_module_at_forward.1} parent=5 // pred_check_branch
      %219 = sbr.rel (%p216) target = $region40
    $region39: #{se_module_at_forward.1} parent=5 // pred_region
      %s220 = ssub.s32 %s13, 1
      %p221 = scmp.lt.s32.totalorder %s18, 1
      %s222 = scalar_select %p221, %s18, 1
      %s223 = smul.addr %s222, 32
      %s224 = smul.addr %s223, 8
      %s225 = scalar_lea.vmem %s0, %s224
      %p226 = pneg %p39
      %p227 = pneg %p36
      %p228 = pneg %p60
      %p229 = pneg %p57
      %p230 = pneg %p81
      %p231 = pneg %p78
      %p232 = pneg %p102
      %p233 = pneg %p99
      %p234 = pneg %p123
      %p235 = pneg %p120
      %p236 = pneg %p149
      %p237 = pneg %p146
      %p238 = scmp.lt.s32.totalorder %s18, 1
      %s239 = scalar_select %p238, %s18, 1
      %s240 = smul.addr %s239, 32
      %s241 = smul.addr %s240, 8
      %s242 = scalar_lea.vmem %s5, %s241
      %p243 = pneg %p175
      %p244 = pneg %p172
      %p245 = scmp.lt.s32.totalorder %s18, 1
      %s246 = scalar_select %p245, %s18, 1
      %s247 = smul.addr %s246, 16
      %s248 = smul.addr %s247, 8
      %s249 = scalar_lea.vmem %s6, %s248
      %p250 = scmp.lt.s32.totalorder %s18, 1
      %s251 = scalar_select %p250, %s18, 1
      %s252 = smul.addr %s251, 32
      %s253 = smul.addr %s252, 8
      %s254 = scalar_lea.vmem %s0, %s253
      %p255 = scmp.lt.s32.totalorder %s18, 1
      %s256 = scalar_select %p255, %s18, 1
      %s257 = smul.addr %s256, 32
      %s258 = smul.addr %s257, 8
      %s259 = scalar_lea.vmem %s5, %s258
      %p260 = scmp.lt.s32.totalorder %s18, 1
      %s261 = scalar_select %p260, %s18, 1
      %s262 = smul.addr %s261, 16
      %s263 = smul.addr %s262, 8
      %s264 = scalar_lea.vmem %s6, %s263
      %v265 = vld [vmem:[%s254] sm:$0xff]
      %v266 = vld [vmem:[%s254 + $0x8] sm:$0xff]
      %v267 = vld [vmem:[%s254 + $0x10] sm:$0xff]
      %v268 = vld [vmem:[%s254 + $0x18] sm:$0xff]
      %v269 = vld [vmem:[%s254 + $0x20] sm:$0xff]
      %v270 = vld [vmem:[%s254 + $0x28] sm:$0xff]
      %v271 = vld [vmem:[%s254 + $0x30] sm:$0xff]
      %v272 = vld [vmem:[%s254 + $0x38] sm:$0xff]
      %v273 = vld [vmem:[%s254 + $0x40] sm:$0xff]
      %v274 = vld [vmem:[%s254 + $0x48] sm:$0xff]
      %v275 = vld [vmem:[%s254 + $0x50] sm:$0xff]
      %v276 = vld [vmem:[%s254 + $0x58] sm:$0xff]
      %v277 = vld [vmem:[%s254 + $0x60] sm:$0xff]
      %v278 = vld [vmem:[%s254 + $0x68] sm:$0xff]
      %v279 = vld [vmem:[%s254 + $0x70] sm:$0xff]
      %v280 = vld [vmem:[%s254 + $0x78] sm:$0xff]
      %v281 = vld [vmem:[%s254 + $0x80] sm:$0xff]
      %v282 = vld [vmem:[%s254 + $0x88] sm:$0xff]
      %v283 = vld [vmem:[%s254 + $0x90] sm:$0xff]
      %v284 = vld [vmem:[%s254 + $0x98] sm:$0xff]
      %v285 = vld [vmem:[%s254 + $0xa0] sm:$0xff]
      %v286 = vld [vmem:[%s254 + $0xa8] sm:$0xff]
      %v287 = vld [vmem:[%s254 + $0xb0] sm:$0xff]
      %v288 = vld [vmem:[%s254 + $0xb8] sm:$0xff]
      %v289 = vld [vmem:[%s254 + $0xc0] sm:$0xff]
      %v290 = vld [vmem:[%s254 + $0xc8] sm:$0xff]
      %v291 = vld [vmem:[%s254 + $0xd0] sm:$0xff]
      %v292 = vld [vmem:[%s254 + $0xd8] sm:$0xff]
      %v293 = vld [vmem:[%s254 + $0xe0] sm:$0xff]
      %v294 = vld [vmem:[%s254 + $0xe8] sm:$0xff]
      %v295 = vld [vmem:[%s254 + $0xf0] sm:$0xff]
      %v296 = vld [vmem:[%s254 + $0xf8] sm:$0xff]
      %v297 = vadd.f32 %v265, %v266
      %298 = vadd.xlane.f32.xlu0 %v297
      %v299 = vpop.xlane.xlu0 %298
      %v300 = vadd.f32 %v267, %v268
      %301 = vadd.xlane.f32.xlu0 %v300
      %v302 = vpop.xlane.xlu0 %301
      %v303 = vadd.f32 %v269, %v270
      %304 = vadd.xlane.f32.xlu0 %v303
      %v305 = vpop.xlane.xlu0 %304
      %v306 = vadd.f32 %v271, %v272
      %307 = vadd.xlane.f32.xlu0 %v306
      %v308 = vpop.xlane.xlu0 %307
      %v309 = vadd.f32 %v273, %v274
      %310 = vadd.xlane.f32.xlu0 %v309
      %v311 = vpop.xlane.xlu0 %310
      %v312 = vadd.f32 %v275, %v276
      %313 = vadd.xlane.f32.xlu0 %v312
      %v314 = vpop.xlane.xlu0 %313
      %v315 = vadd.f32 %v277, %v278
      %316 = vadd.xlane.f32.xlu0 %v315
      %v317 = vpop.xlane.xlu0 %316
      %v318 = vadd.f32 %v279, %v280
      %319 = vadd.xlane.f32.xlu0 %v318
      %v320 = vpop.xlane.xlu0 %319
      %v321 = vadd.f32 %v281, %v282
      %322 = vadd.xlane.f32.xlu0 %v321
      %v323 = vpop.xlane.xlu0 %322
      %v324 = vadd.f32 %v283, %v284
      %325 = vadd.xlane.f32.xlu0 %v324
      %v326 = vpop.xlane.xlu0 %325
      %v327 = vadd.f32 %v285, %v286
      %328 = vadd.xlane.f32.xlu0 %v327
      %v329 = vpop.xlane.xlu0 %328
      %v330 = vadd.f32 %v287, %v288
      %331 = vadd.xlane.f32.xlu0 %v330
      %v332 = vpop.xlane.xlu0 %331
      %v333 = vadd.f32 %v289, %v290
      %334 = vadd.xlane.f32.xlu0 %v333
      %v335 = vpop.xlane.xlu0 %334
      %v336 = vadd.f32 %v291, %v292
      %337 = vadd.xlane.f32.xlu0 %v336
      %v338 = vpop.xlane.xlu0 %337
      %v339 = vadd.f32 %v293, %v294
      %340 = vadd.xlane.f32.xlu0 %v339
      %v341 = vpop.xlane.xlu0 %340
      %v342 = vadd.f32 %v295, %v296
      %343 = vadd.xlane.f32.xlu0 %v342
      %v344 = vpop.xlane.xlu0 %343
      %v345 = vmul.f32 %v299, 0.00390625
      %v346 = vmul.f32 %v302, 0.00390625
      %v347 = vmul.f32 %v305, 0.00390625
      %v348 = vmul.f32 %v308, 0.00390625
      %v349 = vmul.f32 %v311, 0.00390625
      %v350 = vmul.f32 %v314, 0.00390625
      %v351 = vmul.f32 %v317, 0.00390625
      %v352 = vmul.f32 %v320, 0.00390625
      %v353 = vmul.f32 %v323, 0.00390625
      %v354 = vmul.f32 %v326, 0.00390625
      %v355 = vmul.f32 %v329, 0.00390625
      %v356 = vmul.f32 %v332, 0.00390625
      %v357 = vmul.f32 %v335, 0.00390625
      %v358 = vmul.f32 %v338, 0.00390625
      %v359 = vmul.f32 %v341, 0.00390625
      %v360 = vmul.f32 %v344, 0.00390625
      %v361 = vld [vmem:[%s1] sm:$0xff]
      %v362 = vld [vmem:[%s1 + $0x8] sm:$0xff]
      %v363 = vld [vmem:[%s1 + $0x10] sm:$0xff]
      %v364 = vld [vmem:[%s1 + $0x18] sm:$0xff]
      %v365 = vld [vmem:[%s1 + $0x20] sm:$0xff]
      %v366 = vld [vmem:[%s1 + $0x28] sm:$0xff]
      %v367 = vld [vmem:[%s1 + $0x30] sm:$0xff]
      %v368 = vld [vmem:[%s1 + $0x38] sm:$0xff]
      %v369 = vld [vmem:[%s1 + $0x40] sm:$0xff]
      %v370 = vld [vmem:[%s1 + $0x48] sm:$0xff]
      %v371 = vld [vmem:[%s1 + $0x50] sm:$0xff]
      %v372 = vld [vmem:[%s1 + $0x58] sm:$0xff]
      %v373 = vld [vmem:[%s1 + $0x60] sm:$0xff]
      %v374 = vld [vmem:[%s1 + $0x68] sm:$0xff]
      %v375 = vld [vmem:[%s1 + $0x70] sm:$0xff]
      %v376 = vld [vmem:[%s1 + $0x78] sm:$0xff]
      %v377 = vld [vmem:[%s2] sm:$0x1]
      %v394 = vlaneseq
      %v395 = vand.u32 %v394, 127
      %v396 = vperm.slane %v345, %v395
      %v397 = vadd.s32 %v395, 4294967288
      %v398 = vperm.slane %v346, %v397
      %vm399 = vcmask 130112
      %v400 = vsel %vm399, %v398, %v396
      %v401 = vadd.s32 %v395, 4294967280
      %v402 = vperm.slane %v347, %v401
      %vm403 = vcmask 195712
      %v404 = vsel %vm403, %v402, %v400
      %v405 = vadd.s32 %v395, 4294967272
      %v406 = vperm.slane %v348, %v405
      %vm407 = vcmask 261312
      %v408 = vsel %vm407, %v406, %v404
      %v409 = vadd.s32 %v395, 4294967264
      %v410 = vperm.slane %v349, %v409
      %vm411 = vcmask 326912
      %v412 = vsel %vm411, %v410, %v408
      %v413 = vadd.s32 %v395, 4294967256
      %v414 = vperm.slane %v350, %v413
      %vm415 = vcmask 392512
      %v416 = vsel %vm415, %v414, %v412
      %v417 = vadd.s32 %v395, 4294967248
      %v418 = vperm.slane %v351, %v417
      %vm419 = vcmask 458112
      %v420 = vsel %vm419, %v418, %v416
      %v421 = vadd.s32 %v395, 4294967240
      %v422 = vperm.slane %v352, %v421
      %vm423 = vcmask 523712
      %v424 = vsel %vm423, %v422, %v420
      %v425 = vadd.s32 %v395, 4294967232
      %v426 = vperm.slane %v353, %v425
      %vm427 = vcmask 589312
      %v428 = vsel %vm427, %v426, %v424
      %v429 = vadd.s32 %v395, 4294967224
      %v430 = vperm.slane %v354, %v429
      %vm431 = vcmask 654912
      %v432 = vsel %vm431, %v430, %v428
      %v433 = vadd.s32 %v395, 4294967216
      %v434 = vperm.slane %v355, %v433
      %vm435 = vcmask 720512
      %v436 = vsel %vm435, %v434, %v432
      %v437 = vadd.s32 %v395, 4294967208
      %v438 = vperm.slane %v356, %v437
      %vm439 = vcmask 786112
      %v440 = vsel %vm439, %v438, %v436
      %v441 = vadd.s32 %v395, 4294967200
      %v442 = vperm.slane %v357, %v441
      %vm443 = vcmask 851712
      %v444 = vsel %vm443, %v442, %v440
      %v445 = vadd.s32 %v395, 4294967192
      %v446 = vperm.slane %v358, %v445
      %vm447 = vcmask 917312
      %v448 = vsel %vm447, %v446, %v444
      %v449 = vadd.s32 %v395, 4294967184
      %v450 = vperm.slane %v359, %v449
      %vm451 = vcmask 982912
      %v452 = vsel %vm451, %v450, %v448
      %v453 = vadd.s32 %v395, 4294967176
      %v454 = vperm.slane %v360, %v453
      %vm455 = vcmask 1048512
      %v456 = vsel %vm455, %v454, %v452
      %458 = vmatpush.msra.mxu0 %v376
      %459 = vmatpush.msra.mxu0 %v375
      %460 = vmatpush.msra.mxu0 %v374
      %461 = vmatpush.msra.mxu0 %v373
      %462 = vmatpush.msra.mxu0 %v372
      %463 = vmatpush.msra.mxu0 %v371
      %464 = vmatpush.msra.mxu0 %v370
      %465 = vmatpush.msra.mxu0 %v369
      %466 = vmatpush.msra.mxu0 %v368
      %467 = vmatpush.msra.mxu0 %v367
      %468 = vmatpush.msra.mxu0 %v366
      %469 = vmatpush.msra.mxu0 %v365
      %470 = vmatpush.msra.mxu0 %v364
      %471 = vmatpush.msra.mxu0 %v363
      %472 = vmatpush.msra.mxu0 %v362
      %473 = vmatpush.msra.mxu0 %v361
      %474 = vmatmul.f32.gmra.mxu0 %v456
      %v475 = vpop.f32.mrf.mxu0
      %v476 = vadd.f32 %v377, %v475
      %477 = vdwg.mxu0
      %v478 = vmax.f32 %v476, 0.0
      %v479 = vld [vmem:[%s3] sm:$0xff]
      %v480 = vld [vmem:[%s3 + $0x8] sm:$0xff]
      %v481 = vld [vmem:[%s4] sm:$0x1]
      %vm482 = vcmask 130048
      %v484 = vsel %vm482, %v478, 0
      %486 = vmatpush.msra.mxu0 0.0
      %487 = vmatpush.msra.mxu0 0.0
      %488 = vmatpush.msra.mxu0 0.0
      %489 = vmatpush.msra.mxu0 0.0
      %490 = vmatpush.msra.mxu0 0.0
      %491 = vmatpush.msra.mxu0 0.0
      %492 = vmatpush.msra.mxu0 0.0
      %493 = vmatpush.msra.mxu0 0.0
      %494 = vmatpush.msra.mxu0 0.0
      %495 = vmatpush.msra.mxu0 0.0
      %496 = vmatpush.msra.mxu0 0.0
      %497 = vmatpush.msra.mxu0 0.0
      %498 = vmatpush.msra.mxu0 0.0
      %499 = vmatpush.msra.mxu0 0.0
      %500 = vmatpush.msra.mxu0 %v480
      %501 = vmatpush.msra.mxu0 %v479
      %502 = vmatmul.f32.gmra.mxu0 %v484
      %v503 = vpop.f32.mrf.mxu0
      %v504 = vadd.f32 %v481, %v503
      %505 = vdwg.mxu0
      %v506 = vsub.f32 0.0, %v504
      %v507 = vmul.f32 %v506, 1.442695
      %v508 = vpow.pop %v507
      %v509 = vadd.f32 %v508, 1.0
      %v510 = vrcp.pop %v509
      %v511 = vmul.f32 %v509, %v510
      %v512 = vsub.f32 1.0, %v511
      %v513 = vmul.f32 %v510, %v512
      %v514 = vadd.f32 %v510, %v513
      %vm515 = vweird.f32 %v509
      %vm516 = vweird.f32 %v510
      %vm517 = vmor %vm515, %vm516
      %v518 = vsel %vm517, %v510, %v514
      %v519 = vand.u32 2147483647, %v509
      %vm520 = vcmp.eq.f32.partialorder %v519, 8.507059e+37
      %v521 = vand.u32 %v509, 2147483648
      %v522 = vor.u32 1.1754944e-38, %v521
      %v523 = vsel %vm520, %v522, %v518
      %v524 = vmul.f32 1.0, %v523
      %v525 = vperm.slane %v524, 0
      %v526 = vlaneseq
      %v527 = vshrl.u32 %v526, 7
      %529 = vset.pattern.permute.xlu0 %v527
      %530 = vperm.xlu0 %529, %v525
      %v531 = vpop.permute.xlu0 %530
      %v532 = vlaneseq
      %v533 = vshrl.u32 %v532, 7
      %v534 = vadd.s32 %v533, 8
      %535 = vset.pattern.permute.xlu0 %v534
      %536 = vperm.xlu0 %535, %v525
      %v537 = vpop.permute.xlu0 %536
      %v538 = vlaneseq
      %v539 = vshrl.u32 %v538, 7
      %v540 = vadd.s32 %v539, 16
      %541 = vset.pattern.permute.xlu0 %v540
      %542 = vperm.xlu0 %541, %v525
      %v543 = vpop.permute.xlu0 %542
      %v544 = vlaneseq
      %v545 = vshrl.u32 %v544, 7
      %v546 = vadd.s32 %v545, 24
      %547 = vset.pattern.permute.xlu0 %v546
      %548 = vperm.xlu0 %547, %v525
      %v549 = vpop.permute.xlu0 %548
      %v550 = vlaneseq
      %v551 = vshrl.u32 %v550, 7
      %v552 = vadd.s32 %v551, 32
      %553 = vset.pattern.permute.xlu0 %v552
      %554 = vperm.xlu0 %553, %v525
      %v555 = vpop.permute.xlu0 %554
      %v556 = vlaneseq
      %v557 = vshrl.u32 %v556, 7
      %v558 = vadd.s32 %v557, 40
      %559 = vset.pattern.permute.xlu0 %v558
      %560 = vperm.xlu0 %559, %v525
      %v561 = vpop.permute.xlu0 %560
      %v562 = vlaneseq
      %v563 = vshrl.u32 %v562, 7
      %v564 = vadd.s32 %v563, 48
      %565 = vset.pattern.permute.xlu0 %v564
      %566 = vperm.xlu0 %565, %v525
      %v567 = vpop.permute.xlu0 %566
      %v568 = vlaneseq
      %v569 = vshrl.u32 %v568, 7
      %v570 = vadd.s32 %v569, 56
      %571 = vset.pattern.permute.xlu0 %v570
      %572 = vperm.xlu0 %571, %v525
      %v573 = vpop.permute.xlu0 %572
      %v574 = vlaneseq
      %v575 = vshrl.u32 %v574, 7
      %v576 = vadd.s32 %v575, 64
      %577 = vset.pattern.permute.xlu0 %v576
      %578 = vperm.xlu0 %577, %v525
      %v579 = vpop.permute.xlu0 %578
      %v580 = vlaneseq
      %v581 = vshrl.u32 %v580, 7
      %v582 = vadd.s32 %v581, 72
      %583 = vset.pattern.permute.xlu0 %v582
      %584 = vperm.xlu0 %583, %v525
      %v585 = vpop.permute.xlu0 %584
      %v586 = vlaneseq
      %v587 = vshrl.u32 %v586, 7
      %v588 = vadd.s32 %v587, 80
      %589 = vset.pattern.permute.xlu0 %v588
      %590 = vperm.xlu0 %589, %v525
      %v591 = vpop.permute.xlu0 %590
      %v592 = vlaneseq
      %v593 = vshrl.u32 %v592, 7
      %v594 = vadd.s32 %v593, 88
      %595 = vset.pattern.permute.xlu0 %v594
      %596 = vperm.xlu0 %595, %v525
      %v597 = vpop.permute.xlu0 %596
      %v598 = vlaneseq
      %v599 = vshrl.u32 %v598, 7
      %v600 = vadd.s32 %v599, 96
      %601 = vset.pattern.permute.xlu0 %v600
      %602 = vperm.xlu0 %601, %v525
      %v603 = vpop.permute.xlu0 %602
      %v604 = vlaneseq
      %v605 = vshrl.u32 %v604, 7
      %v606 = vadd.s32 %v605, 104
      %607 = vset.pattern.permute.xlu0 %v606
      %608 = vperm.xlu0 %607, %v525
      %v609 = vpop.permute.xlu0 %608
      %v610 = vlaneseq
      %v611 = vshrl.u32 %v610, 7
      %v612 = vadd.s32 %v611, 112
      %613 = vset.pattern.permute.xlu0 %v612
      %614 = vperm.xlu0 %613, %v525
      %v615 = vpop.permute.xlu0 %614
      %v616 = vlaneseq
      %v617 = vshrl.u32 %v616, 7
      %v618 = vadd.s32 %v617, 120
      %619 = vset.pattern.permute.xlu0 %v618
      %620 = vperm.xlu0 %619, %v525
      %v621 = vpop.permute.xlu0 %620
      %vm622 = vcmask 7168
      %623 = vst.msk [vmem:[%s264] sm:$0xff] %vm622, %v531
      %624 = vst.msk [vmem:[%s264 + $0x8] sm:$0xff] %vm622, %v537
      %625 = vst.msk [vmem:[%s264 + $0x10] sm:$0xff] %vm622, %v543
      %626 = vst.msk [vmem:[%s264 + $0x18] sm:$0xff] %vm622, %v549
      %627 = vst.msk [vmem:[%s264 + $0x20] sm:$0xff] %vm622, %v555
      %628 = vst.msk [vmem:[%s264 + $0x28] sm:$0xff] %vm622, %v561
      %629 = vst.msk [vmem:[%s264 + $0x30] sm:$0xff] %vm622, %v567
      %630 = vst.msk [vmem:[%s264 + $0x38] sm:$0xff] %vm622, %v573
      %631 = vst.msk [vmem:[%s264 + $0x40] sm:$0xff] %vm622, %v579
      %632 = vst.msk [vmem:[%s264 + $0x48] sm:$0xff] %vm622, %v585
      %633 = vst.msk [vmem:[%s264 + $0x50] sm:$0xff] %vm622, %v591
      %634 = vst.msk [vmem:[%s264 + $0x58] sm:$0xff] %vm622, %v597
      %635 = vst.msk [vmem:[%s264 + $0x60] sm:$0xff] %vm622, %v603
      %636 = vst.msk [vmem:[%s264 + $0x68] sm:$0xff] %vm622, %v609
      %637 = vst.msk [vmem:[%s264 + $0x70] sm:$0xff] %vm622, %v615
      %638 = vst.msk [vmem:[%s264 + $0x78] sm:$0xff] %vm622, %v621
      %v639 = vmul.f32 %v265, %v531
      %v640 = vmul.f32 %v266, %v531
      %v641 = vmul.f32 %v267, %v537
      %v642 = vmul.f32 %v268, %v537
      %v643 = vmul.f32 %v269, %v543
      %v644 = vmul.f32 %v270, %v543
      %v645 = vmul.f32 %v271, %v549
      %v646 = vmul.f32 %v272, %v549
      %v647 = vmul.f32 %v273, %v555
      %v648 = vmul.f32 %v274, %v555
      %v649 = vmul.f32 %v275, %v561
      %v650 = vmul.f32 %v276, %v561
      %v651 = vmul.f32 %v277, %v567
      %v652 = vmul.f32 %v278, %v567
      %v653 = vmul.f32 %v279, %v573
      %v654 = vmul.f32 %v280, %v573
      %v655 = vmul.f32 %v281, %v579
      %v656 = vmul.f32 %v282, %v579
      %v657 = vmul.f32 %v283, %v585
      %v658 = vmul.f32 %v284, %v585
      %v659 = vmul.f32 %v285, %v591
      %v660 = vmul.f32 %v286, %v591
      %v661 = vmul.f32 %v287, %v597
      %v662 = vmul.f32 %v288, %v597
      %v663 = vmul.f32 %v289, %v603
      %v664 = vmul.f32 %v290, %v603
      %v665 = vmul.f32 %v291, %v609
      %v666 = vmul.f32 %v292, %v609
      %v667 = vmul.f32 %v293, %v615
      %v668 = vmul.f32 %v294, %v615
      %v669 = vmul.f32 %v295, %v621
      %v670 = vmul.f32 %v296, %v621
      %671 = vst [vmem:[%s259] sm:$0xff] %v639
      %672 = vst [vmem:[%s259 + $0x8] sm:$0xff] %v640
      %673 = vst [vmem:[%s259 + $0x10] sm:$0xff] %v641
      %674 = vst [vmem:[%s259 + $0x18] sm:$0xff] %v642
      %675 = vst [vmem:[%s259 + $0x20] sm:$0xff] %v643
      %676 = vst [vmem:[%s259 + $0x28] sm:$0xff] %v644
      %677 = vst [vmem:[%s259 + $0x30] sm:$0xff] %v645
      %678 = vst [vmem:[%s259 + $0x38] sm:$0xff] %v646
      %679 = vst [vmem:[%s259 + $0x40] sm:$0xff] %v647
      %680 = vst [vmem:[%s259 + $0x48] sm:$0xff] %v648
      %681 = vst [vmem:[%s259 + $0x50] sm:$0xff] %v649
      %682 = vst [vmem:[%s259 + $0x58] sm:$0xff] %v650
      %683 = vst [vmem:[%s259 + $0x60] sm:$0xff] %v651
      %684 = vst [vmem:[%s259 + $0x68] sm:$0xff] %v652
      %685 = vst [vmem:[%s259 + $0x70] sm:$0xff] %v653
      %686 = vst [vmem:[%s259 + $0x78] sm:$0xff] %v654
      %687 = vst [vmem:[%s259 + $0x80] sm:$0xff] %v655
      %688 = vst [vmem:[%s259 + $0x88] sm:$0xff] %v656
      %689 = vst [vmem:[%s259 + $0x90] sm:$0xff] %v657
      %690 = vst [vmem:[%s259 + $0x98] sm:$0xff] %v658
      %691 = vst [vmem:[%s259 + $0xa0] sm:$0xff] %v659
      %692 = vst [vmem:[%s259 + $0xa8] sm:$0xff] %v660
      %693 = vst [vmem:[%s259 + $0xb0] sm:$0xff] %v661
      %694 = vst [vmem:[%s259 + $0xb8] sm:$0xff] %v662
      %695 = vst [vmem:[%s259 + $0xc0] sm:$0xff] %v663
      %696 = vst [vmem:[%s259 + $0xc8] sm:$0xff] %v664
      %697 = vst [vmem:[%s259 + $0xd0] sm:$0xff] %v665
      %698 = vst [vmem:[%s259 + $0xd8] sm:$0xff] %v666
      %699 = vst [vmem:[%s259 + $0xe0] sm:$0xff] %v667
      %700 = vst [vmem:[%s259 + $0xe8] sm:$0xff] %v668
      %701 = vst [vmem:[%s259 + $0xf0] sm:$0xff] %v669
      %702 = vst [vmem:[%s259 + $0xf8] sm:$0xff] %v670
      %p703 = scmp.lt.s32.totalorder %s18, 1
      %s704 = scalar_select %p703, %s18, 1
      %s705 = smul.addr %s704, 32
      %s706 = smul.addr %s705, 8
      %s707 = scalar_lea.vmem %s5, %s706
      %p708 = scmp.lt.s32.totalorder %s18, 1
      %s709 = scalar_select %p708, %s18, 1
      %s710 = smul.addr %s709, 16
      %s711 = smul.addr %s710, 8
      %s712 = scalar_lea.vmem %s6, %s711
      // Predicated region
      $region41: #{se_module_at_forward.1} parent=39 // pred_check
        %p713 = pneg %p146
      $region42: #{se_module_at_forward.1} parent=39 // pred_check_branch
        %715 = sbr.rel (%p713) target = $region44
      $region43: #{se_module_at_forward.1} parent=39 // pred_region
        _
      $region44: #{se_module_at_forward.1} parent=39 // pred_fallthru
        _
      // Predicated region
      $region45: #{se_module_at_forward.1} parent=39 // pred_check
        %p716 = pneg %p172
      $region46: #{se_module_at_forward.1} parent=39 // pred_check_branch
        %718 = sbr.rel (%p716) target = $region48
      $region47: #{se_module_at_forward.1} parent=39 // pred_region
        _
      $region48: #{se_module_at_forward.1} parent=39 // pred_fallthru
        _
    $region40: #{se_module_at_forward.1} parent=5 // pred_fallthru
      _
    %p719 = scmp.le.s32.totalorder 2, %s13
    // Predicated region
    $region49: #{se_module_at_forward.1} parent=5 // pred_check
      %p720 = pneg %p719
    $region50: #{se_module_at_forward.1} parent=5 // pred_check_branch
      %722 = sbr.rel (%p720) target = $region52
    $region51: #{se_module_at_forward.1} parent=5 // pred_region
      %s723 = ssub.s32 %s13, 2
      // Predicated region
      $region53: #{se_module_at_forward.1} parent=51 // pred_check
        %p724 = pneg %p152
      $region54: #{se_module_at_forward.1} parent=51 // pred_check_branch
        %726 = sbr.rel (%p724) target = $region56
      $region55: #{se_module_at_forward.1} parent=51 // pred_region
        %p727 = scmp.lt.s32.totalorder %s19, 1
        %s728 = scalar_select %p727, %s19, 1
        %s729 = smul.addr %s728, 32
        %s730 = smul.addr %s729, 8
        %s731 = scalar_lea.vmem %s5, %s730
      $region56: #{se_module_at_forward.1} parent=51 // pred_fallthru
        _
      // Predicated region
      $region57: #{se_module_at_forward.1} parent=51 // pred_check
        %p732 = pneg %p178
      $region58: #{se_module_at_forward.1} parent=51 // pred_check_branch
        %734 = sbr.rel (%p732) target = $region60
      $region59: #{se_module_at_forward.1} parent=51 // pred_region
        %p735 = scmp.lt.s32.totalorder %s19, 1
        %s736 = scalar_select %p735, %s19, 1
        %s737 = smul.addr %s736, 16
        %s738 = smul.addr %s737, 8
        %s739 = scalar_lea.vmem %s6, %s738
      $region60: #{se_module_at_forward.1} parent=51 // pred_fallthru
        _
    $region52: #{se_module_at_forward.1} parent=5 // pred_fallthru
      _
  $region6: #{se_module_at_forward.1} parent=0 // loop_footer
    %s17 = sadd.s32 1, %s13
  $region7: #{se_module_at_forward.1} parent=0 // loop_footer_branch
    %12 = sbr.rel target = $region3
  $region8: #{se_module_at_forward.1} parent=0 // loop_exit
    _

</llo_original>
